<compile_context>
chip_gen: v6e
topology: v6e:2x2x1
jax: 0.10.0
libtpu: 0.0.40
codegen_flags: <defaults>
</compile_context>

<pallas_src>
import functools

import jax
import jax.numpy as jnp
from jax.experimental import pallas as pl
from jax.experimental.pallas import tpu as pltpu

_LANES = 128
_MAX_TILE_ROWS = 8192   # 8192*128*4B = 4 MiB per f32 input buffer (x2 inputs, x2 bufs)


def _cdiv(a, b):
    return -(-a // b)


def _round_up(x, m):
    return _cdiv(x, m) * m


def _chip_config():
    """(num_shards, vmem_limit_bytes, is_v7) chosen per TPU generation."""
    try:
        kind = jax.devices()[0].device_kind.lower()
    except Exception:
        kind = ""
    if "v7" in kind:
        # 2 TensorCores per chip; 64 MiB physical VMEM per core -> stay <= 48 MiB.
        return 2, 48 << 20, True
    # v5e / v6e: single TensorCore, 128 MiB physical VMEM.
    return 1, 64 << 20, False


def _rmsle_kernel(p_ref, a_ref, o_ref, *,
                  rows, tile_rows, tiles_per_shard, need_mask):
    c = pl.program_id(0)          # shard (TensorCore) axis
    i = pl.program_id(1)          # row-tile axis (reduction; output block resident)
    groups = tile_rows // 8

    @pl.when(i == 0)
    def _():
        o_ref[...] = jnp.zeros_like(o_ref)

    p = p_ref[...].astype(jnp.float32)
    a = a_ref[...].astype(jnp.float32)

    # Matches the reference form log(x+1): two EUP pushes per element, no divide
    # (keeps the 4-wide VALU slot free on v7x where HBM rate is highest).
    d = jnp.log1p(p) - jnp.log1p(a)
    sq = d * d

    def accumulate(vals):
        # VALU-only grouped partial reduce into the small resident accumulator.
        o_ref[...] += vals.reshape(groups, 8, _LANES).sum(axis=0, keepdims=True)

    if need_mask:
        # Only the tile containing the ragged boundary (and any clamped
        # duplicate tiles past it) pays for the iota/compare/select.
        tile = c * tiles_per_shard + i
        first_partial = rows // tile_rows   # first tile index not fully valid

        @pl.when(tile >= first_partial)
        def _():
            row_ids = tile * tile_rows + jax.lax.broadcasted_iota(
                jnp.int32, (tile_rows, _LANES), 0)
            # Garbage rows may have produced NaN/Inf in sq; select drops them
            # (jnp.where does not propagate NaN from the unselected branch).
            accumulate(jnp.where(row_ids < rows, sq, 0.0))

        @pl.when(tile < first_partial)
        def _():
            accumulate(sq)
    else:
        accumulate(sq)


def rmsle_loss(pred, actual):
    assert pred.shape == actual.shape
    n = pred.size
    itemsize = jnp.dtype(pred.dtype).itemsize
    sub = max(8, 32 // itemsize)   # sublane multiple for the input dtype

    num_shards, vmem_limit, _ = _chip_config()

    p_flat = pred.reshape(-1)
    a_flat = actual.reshape(-1)

    # Lane-aligned prefix goes through the kernel; the (<128-element) tail is
    # summed in the wrapper, so no full jnp.pad HBM copy is ever made.
    n_main = (n // _LANES) * _LANES
    rows = n_main // _LANES

    tail_sq_sum = jnp.zeros((), jnp.float32)
    if n_main < n:
        d_tail = (jnp.log1p(p_flat[n_main:].astype(jnp.float32))
                  - jnp.log1p(a_flat[n_main:].astype(jnp.float32)))
        tail_sq_sum = jnp.sum(d_tail * d_tail)

    if rows < sub:
        # Tiny input: whole thing fits in a vreg or two; not worth a launch.
        if rows:
            d = (jnp.log1p(p_flat[:n_main].astype(jnp.float32))
                 - jnp.log1p(a_flat[:n_main].astype(jnp.float32)))
            tail_sq_sum = tail_sq_sum + jnp.sum(d * d)
        return jnp.sqrt(tail_sq_sum / n)

    # Zero-copy reshape when n is 128-aligned; otherwise a prefix slice
    # (strictly less traffic than the previous full jnp.pad of both inputs).
    p2 = (p_flat if n_main == n else p_flat[:n_main]).reshape(rows, _LANES)
    a2 = (a_flat if n_main == n else a_flat[:n_main]).reshape(rows, _LANES)

    tile_rows = min(_MAX_TILE_ROWS, _round_up(_cdiv(rows, num_shards), sub))
    total_tiles = _cdiv(rows, tile_rows)
    tiles_per_shard = _cdiv(total_tiles, num_shards)
    need_clamp = num_shards * tiles_per_shard != total_tiles
    need_mask = need_clamp or (total_tiles * tile_rows != rows)

    if need_clamp:
        # A trailing shard step may point past the last tile: clamp the DMA to
        # the last valid tile; the in-kernel mask zeroes its contribution.
        def in_index(c, i):
            return (jnp.minimum(c * tiles_per_shard + i, total_tiles - 1), 0)
    else:
        def in_index(c, i):
            return (c * tiles_per_shard + i, 0)

    kernel = functools.partial(
        _rmsle_kernel,
        rows=rows, tile_rows=tile_rows,
        tiles_per_shard=tiles_per_shard, need_mask=need_mask)

    if num_shards > 1:
        # Plain "parallel" does not reliably split across v7x's 2 TCs.
        dims = (pltpu.CORE_PARALLEL, pltpu.ARBITRARY)
    else:
        dims = (pltpu.ARBITRARY, pltpu.ARBITRARY)

    cost = pl.CostEstimate(
        flops=4 * n_main,
        transcendentals=2 * n_main,
        bytes_accessed=2 * n_main * itemsize + num_shards * 8 * _LANES * 4)

    partials = pl.pallas_call(
        kernel,
        out_shape=jax.ShapeDtypeStruct((num_shards, 8, _LANES), jnp.float32),
        grid_spec=pltpu.PrefetchScalarGridSpec(
            num_scalar_prefetch=0,
            grid=(num_shards, tiles_per_shard),
            in_specs=[
                pl.BlockSpec((tile_rows, _LANES), in_index),
                pl.BlockSpec((tile_rows, _LANES), in_index),
            ],
            out_specs=pl.BlockSpec((1, 8, _LANES), lambda c, i: (c, 0, 0)),
        ),
        compiler_params=pltpu.CompilerParams(
            dimension_semantics=dims,
            vmem_limit_bytes=vmem_limit,
        ),
        cost_estimate=cost,
    )(p2, a2)

    # Tiny final reduction over num_shards*8*128 partial sums + the tail;
    # mean uses the true element count n.
    return jnp.sqrt((jnp.sum(partials) + tail_sq_sum) / n)


def rmsle_ref(pred, actual):
    d = jnp.log1p(pred.astype(jnp.float32)) - jnp.log1p(actual.astype(jnp.float32))
    return jnp.sqrt(jnp.mean(d * d))


if __name__ == "__main__":
    key = jax.random.PRNGKey(0)
    k1, k2 = jax.random.split(key)
    shape = (2, 4, 16, 16)  # NCHW-like example input
    # loss takes log(x + 1); keep x > -1 as in typical usage
    pred = jax.random.uniform(k1, shape, jnp.float32, minval=0.0, maxval=5.0)
    actual = jax.random.uniform(k2, shape, jnp.float32, minval=0.0, maxval=5.0)

    out = jax.block_until_ready(rmsle_loss(pred, actual))
    ref = jax.block_until_ready(rmsle_ref(pred, actual))
    assert jnp.allclose(out, ref, rtol=1e-5, atol=1e-6), (out, ref)

    # Lane-unaligned size exercises the wrapper tail path (no jnp.pad copy).
    k3, k4 = jax.random.split(k1)
    p_u = jax.random.uniform(k3, (3, 343), jnp.float32, minval=0.0, maxval=5.0)
    a_u = jax.random.uniform(k4, (3, 343), jnp.float32, minval=0.0, maxval=5.0)
    out_u = jax.block_until_ready(rmsle_loss(p_u, a_u))
    ref_u = jax.block_until_ready(rmsle_ref(p_u, a_u))
    assert jnp.allclose(out_u, ref_u, rtol=1e-5, atol=1e-6), (out_u, ref_u)

    print("KERNEL_OK")
</pallas_src>

<mosaic_0001>
module attributes {stable_mosaic.version = 11 : i64} {
  func.func @_rmsle_kernel(%arg0: i32, %arg1: i32, %arg2: memref<16x128xf32, #tpu.memory_space<vmem>>, %arg3: memref<16x128xf32, #tpu.memory_space<vmem>>, %arg4: memref<1x8x128xf32, #tpu.memory_space<vmem>>) attributes {dimension_semantics = [#tpu.dimension_semantics<arbitrary>, #tpu.dimension_semantics<arbitrary>], iteration_bounds = array<i64: 1, 1>, scalar_prefetch = 0 : i64, scratch_operands = 0 : i64, tpu.core_type = #tpu.core_type<tc>, window_params = [{transform_indices = @transform_0, window_bounds = array<i64: 16, 128>}, {transform_indices = @transform_1, window_bounds = array<i64: 16, 128>}, {transform_indices = @transform_2, window_bounds = array<i64: 1, 8, 128>}]} {
    %c0_i32 = arith.constant 0 : i32
    %0 = arith.cmpi eq, %arg1, %c0_i32 : i32
    %1 = arith.extui %0 : i1 to i32
    %c0_i32_0 = arith.constant 0 : i32
    %2 = arith.cmpi ne, %1, %c0_i32_0 : i32
    scf.if %2 {
      %cst_10 = arith.constant 0.000000e+00 : f32
      %15 = vector.broadcast %cst_10 : f32 to vector<1x8x128xf32>
      %c0_11 = arith.constant 0 : index
      %c0_12 = arith.constant 0 : index
      %c0_13 = arith.constant 0 : index
      %16 = vector.load %arg4[%c0_11, %c0_12, %c0_13] : memref<1x8x128xf32, #tpu.memory_space<vmem>>, vector<1x8x128xf32>
      tpu.vector_store %arg4[%c0_11, %c0_12, %c0_13], %15 {strides = array<i32>} : memref<1x8x128xf32, #tpu.memory_space<vmem>>, vector<1x8x128xf32>,
    } else {
    }
    %c0 = arith.constant 0 : index
    %c0_1 = arith.constant 0 : index
    %3 = vector.load %arg2[%c0, %c0_1] : memref<16x128xf32, #tpu.memory_space<vmem>>, vector<16x128xf32>
    %c0_2 = arith.constant 0 : index
    %c0_3 = arith.constant 0 : index
    %4 = vector.load %arg3[%c0_2, %c0_3] : memref<16x128xf32, #tpu.memory_space<vmem>>, vector<16x128xf32>
    %5 = math.log1p %3 : vector<16x128xf32>
    %6 = math.log1p %4 : vector<16x128xf32>
    %7 = arith.subf %5, %6 : vector<16x128xf32>
    %8 = arith.mulf %7, %7 : vector<16x128xf32>
    %c0_4 = arith.constant 0 : index
    %c0_5 = arith.constant 0 : index
    %c0_6 = arith.constant 0 : index
    %9 = vector.load %arg4[%c0_4, %c0_5, %c0_6] : memref<1x8x128xf32, #tpu.memory_space<vmem>>, vector<1x8x128xf32>
    %10 = vector.shape_cast %8 : vector<16x128xf32> to vector<2x8x128xf32>
    %cst = arith.constant dense<0.000000e+00> : vector<8x128xf32>
    %11 = vector.multi_reduction <add>, %10, %cst [0] : vector<2x8x128xf32> to vector<8x128xf32>
    %12 = vector.shape_cast %11 : vector<8x128xf32> to vector<1x8x128xf32>
    %13 = arith.addf %9, %12 : vector<1x8x128xf32>
    %c0_7 = arith.constant 0 : index
    %c0_8 = arith.constant 0 : index
    %c0_9 = arith.constant 0 : index
    %14 = vector.load %arg4[%c0_7, %c0_8, %c0_9] : memref<1x8x128xf32, #tpu.memory_space<vmem>>, vector<1x8x128xf32>
    tpu.vector_store %arg4[%c0_7, %c0_8, %c0_9], %13 {strides = array<i32>} : memref<1x8x128xf32, #tpu.memory_space<vmem>>, vector<1x8x128xf32>,
    return
  }
  func.func @transform_0(%arg0: i32, %arg1: i32) -> (i32, i32) {
    %c1_i32 = arith.constant 1 : i32
    %0 = arith.muli %arg0, %c1_i32 : i32
    %1 = arith.addi %0, %arg1 : i32
    %c0_i32 = arith.constant 0 : i32
    %c0_i32_0 = arith.constant 0 : i32
    return %1, %c0_i32 : i32, i32
  }
  func.func @transform_1(%arg0: i32, %arg1: i32) -> (i32, i32) {
    %c1_i32 = arith.constant 1 : i32
    %0 = arith.muli %arg0, %c1_i32 : i32
    %1 = arith.addi %0, %arg1 : i32
    %c0_i32 = arith.constant 0 : i32
    %c0_i32_0 = arith.constant 0 : i32
    return %1, %c0_i32 : i32, i32
  }
  func.func @transform_2(%arg0: i32, %arg1: i32) -> (i32, i32, i32) {
    %c0_i32 = arith.constant 0 : i32
    %c0_i32_0 = arith.constant 0 : i32
    %c0_i32_1 = arith.constant 0 : i32
    return %arg0, %c0_i32, %c0_i32_0 : i32, i32, i32
  }
}

</mosaic_0001>

<llo_original>
// kernel: tpu_custom_call.1
$region0: #{tpu_custom_call.1}
  #allocation0 [shape = 'u32[]', space=smem, size = 0x4, offset = 0x4, fixed_abs, tag = 'smem constant byte address 0x4 - core index']
  #allocation1 [shape = 'u32[144,128]{1,0:T(1,128)}', space=vmem, size = 0x12000, scoped, tag = 'internal scratch']
  %s0 = inlined_call_operand.hbm [shape: f32[16,128], index: 0, kind: input, shape index: {}]
  %s1 = inlined_call_operand.hbm [shape: f32[16,128], index: 1, kind: input, shape index: {}]
  %s2 = inlined_call_operand.hbm [shape: f32[1,8,128], index: 2, kind: output, shape index: {}]
  %s3 = sld [smem:[#allocation0]]
  $region30: #{tpu_custom_call.1} parent=0
    _
  %s5 = ssub.s32 1, %s3
  %s6 = scalar_select 0, %s5, %s3
  $region1: #{tpu_custom_call.1} parent=0
    #allocation2 [shape = 'u8[8192]{0}', space=vmem, size = 0x2000, scoped, tag = 'input window, operand 0, single buffered']
    #allocation3 [shape = 's32[1]{0}', space=sflag, size = 0x4, scoped, tag = 'scoped memory for tpu_custom_call.1']
    #allocation4 [shape = 's32[1]{0}', space=sflag, size = 0x4, scoped, tag = 'scoped memory for tpu_custom_call.1']
    #allocation5 [shape = 'u8[8192]{0}', space=vmem, size = 0x2000, scoped, tag = 'input window, operand 1, single buffered']
    #allocation6 [shape = 's32[1]{0}', space=sflag, size = 0x4, scoped, tag = 'scoped memory for tpu_custom_call.1']
    #allocation7 [shape = 'u8[4096]{0}', space=vmem, size = 0x1000, scoped, tag = 'output window, operand 0, single buffered']
    %7 = vsyncpa [#allocation3], 0
    %8 = vsyncpa [#allocation6], 0
    %9 = vsyncpa [#allocation4], 0
    // Predicated region
    $region2: #{tpu_custom_call.1} parent=1 // pred_check
      _
    $region3: #{tpu_custom_call.1} parent=1 // pred_check_branch
      %11 = sbr.rel (0) target = $region5
    $region4: #{tpu_custom_call.1} parent=1 // pred_region
      %s12 = sadd.s32 0, 0
      %s13 = smul.u32 2, %s12
      %s15 = ssub.s32 256, 256
      %16 = vsyncadd [#allocation3], %s15
      %s17 = smul.addr %s13, 128
      %s18 = scalar_lea.hbm %s0, %s17
      %s19 = sshll.u32 [#allocation2], 4
      %s20 = int_to_ptr.vmem [resolvable:$true] %s19
      %25 = dma.hbm_to_vmem [thread:$0]  %s18, 256, %s20, [#allocation3], 128, 128, 8
    $region5: #{tpu_custom_call.1} parent=1 // pred_fallthru
      _
    // Predicated region
    $region6: #{tpu_custom_call.1} parent=1 // pred_check
      _
    $region7: #{tpu_custom_call.1} parent=1 // pred_check_branch
      %27 = sbr.rel (0) target = $region9
    $region8: #{tpu_custom_call.1} parent=1 // pred_region
      %s28 = sadd.s32 0, 0
      %s29 = smul.u32 2, %s28
      %s31 = ssub.s32 256, 256
      %32 = vsyncadd [#allocation6], %s31
      %s33 = smul.addr %s29, 128
      %s34 = scalar_lea.hbm %s1, %s33
      %s35 = sshll.u32 [#allocation5], 4
      %s36 = int_to_ptr.vmem [resolvable:$true] %s35
      %41 = dma.hbm_to_vmem [thread:$0]  %s34, 256, %s36, [#allocation6], 128, 128, 8
    $region9: #{tpu_custom_call.1} parent=1 // pred_fallthru
      _
    // Predicated region
    $region10: #{tpu_custom_call.1} parent=1 // pred_check
      _
    $region11: #{tpu_custom_call.1} parent=1 // pred_check_branch
      %43 = sbr.rel (0) target = $region13
    $region12: #{tpu_custom_call.1} parent=1 // pred_region
      %44 = dma.done [#allocation3], 256
    $region13: #{tpu_custom_call.1} parent=1 // pred_fallthru
      _
    // Predicated region
    $region14: #{tpu_custom_call.1} parent=1 // pred_check
      _
    $region15: #{tpu_custom_call.1} parent=1 // pred_check_branch
      %46 = sbr.rel (0) target = $region17
    $region16: #{tpu_custom_call.1} parent=1 // pred_region
      %47 = dma.done [#allocation6], 256
    $region17: #{tpu_custom_call.1} parent=1 // pred_fallthru
      _
    %s48 = sadd.s32 0, 0
    %s49 = smul.u32 2, %s48
    %s50 = sadd.s32 0, 0
    %s51 = smul.u32 2, %s50
    %p52 = scmp.eq.s32.totalorder 0, 0
    // Predicated region
    $region18: #{tpu_custom_call.1} parent=1 // pred_check
      %p53 = pneg %p52
    $region19: #{tpu_custom_call.1} parent=1 // pred_check_branch
      %55 = sbr.rel (%p53) target = $region21
    $region20: #{tpu_custom_call.1} parent=1 // pred_region
      %56 = vst [vmem:[#allocation7] sm:$0xff] 0.0
    $region21: #{tpu_custom_call.1} parent=1 // pred_fallthru
      _
    %v57 = vld [vmem:[#allocation2] sm:$0xff]
    %v58 = vld [vmem:[#allocation2 + $0x8] sm:$0xff]
    %v59 = vld [vmem:[#allocation5] sm:$0xff]
    %v60 = vld [vmem:[#allocation5 + $0x8] sm:$0xff]
    %v61 = vadd.f32 %v57, 1.0
    %v62 = vlog2.pop %v61
    %v63 = vmul.f32 %v62, 0.6931472
    %v64 = vmul.f32 -0.5, %v57
    %v65 = vadd.f32 %v64, 1.0
    %v66 = vmul.f32 %v65, %v57
    %v67 = vand.u32 2147483647, %v57
    %vm68 = vcmp.lt.f32.partialorder %v67, 0.0004427343
    %v69 = vsel %vm68, %v66, %v63
    %v70 = vadd.f32 %v58, 1.0
    %v71 = vlog2.pop %v70
    %v72 = vmul.f32 %v71, 0.6931472
    %v73 = vmul.f32 -0.5, %v58
    %v74 = vadd.f32 %v73, 1.0
    %v75 = vmul.f32 %v74, %v58
    %v76 = vand.u32 2147483647, %v58
    %vm77 = vcmp.lt.f32.partialorder %v76, 0.0004427343
    %v78 = vsel %vm77, %v75, %v72
    %v79 = vadd.f32 %v59, 1.0
    %v80 = vlog2.pop %v79
    %v81 = vmul.f32 %v80, 0.6931472
    %v82 = vmul.f32 -0.5, %v59
    %v83 = vadd.f32 %v82, 1.0
    %v84 = vmul.f32 %v83, %v59
    %v85 = vand.u32 2147483647, %v59
    %vm86 = vcmp.lt.f32.partialorder %v85, 0.0004427343
    %v87 = vsel %vm86, %v84, %v81
    %v88 = vadd.f32 %v60, 1.0
    %v89 = vlog2.pop %v88
    %v90 = vmul.f32 %v89, 0.6931472
    %v91 = vmul.f32 -0.5, %v60
    %v92 = vadd.f32 %v91, 1.0
    %v93 = vmul.f32 %v92, %v60
    %v94 = vand.u32 2147483647, %v60
    %vm95 = vcmp.lt.f32.partialorder %v94, 0.0004427343
    %v96 = vsel %vm95, %v93, %v90
    %v97 = vsub.f32 %v69, %v87
    %v98 = vsub.f32 %v78, %v96
    %v99 = vmul.f32 %v97, %v97
    %v100 = vmul.f32 %v98, %v98
    %v101 = vld [vmem:[#allocation7] sm:$0xff]
    %v102 = vadd.f32 %v99, %v100
    %v103 = vadd.f32 %v101, %v102
    %104 = vst [vmem:[#allocation7] sm:$0xff] %v103
    // Predicated region
    $region22: #{tpu_custom_call.1} parent=1 // pred_check
      _
    $region23: #{tpu_custom_call.1} parent=1 // pred_check_branch
      %106 = sbr.rel (0) target = $region25
    $region24: #{tpu_custom_call.1} parent=1 // pred_region
      %s108 = ssub.s32 128, 128
      %109 = vsyncadd [#allocation4], %s108
      %s111 = sshll.u32 [#allocation7], 4
      %s112 = int_to_ptr.vmem [resolvable:$true] %s111
      %114 = dma.vmem_to_hbm [thread:$0]  %s112, 128, %s2, [#allocation4]
    $region25: #{tpu_custom_call.1} parent=1 // pred_fallthru
      _
    // Predicated region
    $region26: #{tpu_custom_call.1} parent=1 // pred_check
      _
    $region27: #{tpu_custom_call.1} parent=1 // pred_check_branch
      %116 = sbr.rel (0) target = $region29
    $region28: #{tpu_custom_call.1} parent=1 // pred_region
      %117 = dma.done [#allocation4], 128
    $region29: #{tpu_custom_call.1} parent=1 // pred_fallthru
      _
    %118 = vsyncpa [#allocation3], 1
    %119 = vsyncpa [#allocation6], 1
    %120 = vsyncpa [#allocation4], 1

</llo_original>
